<compile_context>
chip_gen: v7x
topology: tpu7x:2x2x1
jax: 0.10.0
libtpu: 0.0.40
codegen_flags: <defaults>
</compile_context>

<pallas_src>
import math
import functools

import jax
import jax.numpy as jnp
from jax.experimental import pallas as pl
from jax.experimental.pallas import tpu as pltpu


def _round_up(n, m):
    return ((n + m - 1) // m) * m


def _tpu_defaults():
    """Per-generation VMEM limit, tile target and EUP-exp dtype selection."""
    kind = ""
    try:
        kind = jax.devices()[0].device_kind.lower()
    except Exception:
        pass
    vmem_phys = None
    try:
        vmem_phys = getattr(pltpu.get_tpu_info(), "vmem_capacity_bytes", None)
    except Exception:
        vmem_phys = None
    if vmem_phys is None:
        # v5e / v6e carry 128 MiB VMEM; otherwise stay conservative (v7x: 64 MiB).
        vmem_phys = 128 * 1024 * 1024 if ("v5" in kind or "v6" in kind) else 64 * 1024 * 1024
    if vmem_phys >= 128 * 1024 * 1024:
        vmem_limit = 100 * 1024 * 1024   # plenty of headroom on 128 MiB parts
        tile_target = 512                # bigger tiles amortize per-step pipeline overhead
    else:
        vmem_limit = 48 * 1024 * 1024    # fits v7x's 64 MiB physical VMEM
        tile_target = 256
    # bf16 exp only where the EUP has a bf16 path (v6e / v7x); f32 on v5e and older.
    exp_bf16 = ("v6" in kind) or ("v7" in kind)
    return vmem_limit, tile_target, exp_bf16


# ---------------------------------------------------------------------------
# Pass 1: LayerNorm + fused QKV projection (scale folded into Q weights).
# Emits q, v as (B, S, E) bf16 and K pre-transposed as (B, E, S) bf16.
# ---------------------------------------------------------------------------
def _ln_qkv_kernel(x_ref, gamma_ref, beta_ref, wqkv_t_ref, bqkv_ref,
                   q_ref, kt_ref, v_ref, *, eps):
    x = x_ref[0].astype(jnp.float32)                 # (Ts, E)
    E = x.shape[-1]

    # LayerNorm statistics in f32 (matches torch.nn.LayerNorm).
    mean = jnp.mean(x, axis=-1, keepdims=True)
    var = jnp.mean((x - mean) ** 2, axis=-1, keepdims=True)
    xn = (x - mean) * jax.lax.rsqrt(var + eps)
    xn = xn * gamma_ref[0] + beta_ref[0]             # (Ts, E)

    # Fused QKV projection: bf16 operands, f32 accumulation on the MXU.
    qkv = jnp.dot(xn.astype(jnp.bfloat16), wqkv_t_ref[...],
                  preferred_element_type=jnp.float32) + bqkv_ref[0]    # (Ts, 3E) f32

    q_ref[0] = qkv[:, 0 * E:1 * E].astype(q_ref.dtype)        # pre-scaled by 1/sqrt(Dh)
    # K pre-transposed once per row tile (XLU), so pass 2 never transposes.
    kt_ref[0] = qkv[:, 1 * E:2 * E].T.astype(kt_ref.dtype)    # (E, Ts)
    v_ref[0] = qkv[:, 2 * E:3 * E].astype(v_ref.dtype)


# ---------------------------------------------------------------------------
# Pass 2: per-query-tile multi-head attention + output projection.
# ---------------------------------------------------------------------------
def _attn_kernel(q_ref, kt_ref, v_ref, wo_t_ref, bo_ref, o_ref, attn_scratch,
                 *, num_heads, s_valid, exp_bf16):
    q = q_ref[0]                                     # (Tq, E)     bf16 (pre-scaled)
    kt = kt_ref[0]                                   # (E,  S_pad) bf16
    v = v_ref[0]                                     # (S_pad, E)  bf16
    Tq, E = q.shape
    S_pad = kt.shape[-1]
    Dh = E // num_heads

    need_mask = s_valid < S_pad
    if need_mask:
        key_ids = jax.lax.broadcasted_iota(jnp.int32, (Tq, S_pad), 1)
        key_pad = key_ids >= s_valid

    for h in range(num_heads):                       # static unroll; heads are few
        sl = slice(h * Dh, (h + 1) * Dh)
        # scores = qh @ kh^T via pre-transposed K -> plain row-major matmul, f32 acc.
        scores = jnp.dot(q[:, sl], kt[sl, :],
                         preferred_element_type=jnp.float32)        # (Tq, S_pad)
        if need_mask:
            scores = jnp.where(key_pad, jnp.float32(-1e30), scores)

        # Numerically-stable softmax with deferred normalization.
        m = jnp.max(scores, axis=-1, keepdims=True)                  # f32
        if exp_bf16:
            # v6e/v7x: exp on the EUP in bf16 (~2x), max-subtraction kept in f32.
            p = jnp.exp((scores - m).astype(jnp.bfloat16))           # (Tq, S_pad) bf16
            row_sum = jnp.sum(p.astype(jnp.float32), axis=-1, keepdims=True)
            pv_p = p
        else:
            # v5e: EUP has no bf16 path -> keep exp in f32.
            p = jnp.exp(scores - m)
            row_sum = jnp.sum(p, axis=-1, keepdims=True)
            pv_p = p.astype(jnp.bfloat16)

        oh = jnp.dot(pv_p, v[:, sl], preferred_element_type=jnp.float32)  # (Tq, Dh) f32
        # Normalize the small (Tq, Dh) tile (EUP reciprocal), cast once into the bf16 slab.
        oh = oh * pl.reciprocal(row_sum, approx=True)
        attn_scratch[:, sl] = oh.astype(jnp.bfloat16)

    # Output projection: single full-width (K = E) matmul straight from the bf16 slab.
    out = jnp.dot(attn_scratch[...], wo_t_ref[...],
                  preferred_element_type=jnp.float32) + bo_ref[0]
    o_ref[0] = out.astype(o_ref.dtype)


# ---------------------------------------------------------------------------
# Host wrapper
# ---------------------------------------------------------------------------
def mhsa_block(x, gamma, beta, in_proj_w, in_proj_b, out_proj_w, out_proj_b,
               *, num_heads, eps=1e-5):
    """x: (B, S, E) float32.  Returns (B, S, E) float32."""
    B, S, E = x.shape
    assert E % num_heads == 0
    Dh = E // num_heads
    scale = 1.0 / math.sqrt(Dh)

    vmem_limit, tile_target, exp_bf16 = _tpu_defaults()

    # Robust tiling: fixed tile T, pad S up to a multiple of T, mask padded keys in-kernel.
    T = _round_up(S, 8) if S <= tile_target else tile_target
    S_pad = _round_up(S, T)
    x_p = x if S_pad == S else jnp.pad(x, ((0, 0), (0, S_pad - S), (0, 0)))

    # Fold the 1/sqrt(Dh) scale into the Q rows of the in-projection (one-time, host side).
    in_w = jnp.concatenate([in_proj_w[:E] * scale, in_proj_w[E:]], axis=0)   # (3E, E)
    in_b = jnp.concatenate([in_proj_b[:E] * scale, in_proj_b[E:]], axis=0)   # (3E,)

    # Pre-transpose so kernels do plain row-major matmuls; weights in bf16.
    wqkv_t = in_w.T.astype(jnp.bfloat16)             # (E, 3E)
    wo_t = out_proj_w.T.astype(jnp.bfloat16)         # (E, E)
    gamma2 = gamma.reshape(1, E).astype(jnp.float32)
    beta2 = beta.reshape(1, E).astype(jnp.float32)
    bqkv2 = in_b.reshape(1, 3 * E).astype(jnp.float32)
    bo2 = out_proj_b.reshape(1, E).astype(jnp.float32)

    def const_spec(arr):
        # Constant operands: index never changes -> single-buffer (no duplicate VMEM copy).
        return pl.BlockSpec(arr.shape, lambda b, i: (0, 0), pipeline_mode=pl.Buffered(1))

    cparams1 = pltpu.CompilerParams(
        dimension_semantics=("parallel", "parallel"),
        vmem_limit_bytes=vmem_limit)

    # ---- Pass 1: LayerNorm + QKV projection -> bf16 q / k^T / v ----
    q, k_t, v = pl.pallas_call(
        functools.partial(_ln_qkv_kernel, eps=eps),
        out_shape=(jax.ShapeDtypeStruct((B, S_pad, E), jnp.bfloat16),
                   jax.ShapeDtypeStruct((B, E, S_pad), jnp.bfloat16),
                   jax.ShapeDtypeStruct((B, S_pad, E), jnp.bfloat16)),
        grid_spec=pltpu.PrefetchScalarGridSpec(
            num_scalar_prefetch=0,
            grid=(B, S_pad // T),
            in_specs=[
                pl.BlockSpec((1, T, E), lambda b, i: (b, i, 0)),     # x tile
                const_spec(gamma2), const_spec(beta2),
                const_spec(wqkv_t), const_spec(bqkv2),
            ],
            out_specs=(pl.BlockSpec((1, T, E), lambda b, i: (b, i, 0)),   # q
                       pl.BlockSpec((1, E, T), lambda b, i: (b, 0, i)),   # k^T
                       pl.BlockSpec((1, T, E), lambda b, i: (b, i, 0))),  # v
        ),
        compiler_params=cparams1,
    )(x_p, gamma2, beta2, wqkv_t, bqkv2)

    # ---- Pass 2: query-tiled attention + output projection ----
    # Shard TensorCores over batches when B >= 2 (each core keeps its own batch's K/V).
    dims2 = ("parallel", "arbitrary") if B >= 2 else ("parallel", "parallel")
    cparams2 = pltpu.CompilerParams(
        dimension_semantics=dims2,
        vmem_limit_bytes=vmem_limit)

    out = pl.pallas_call(
        functools.partial(_attn_kernel, num_heads=num_heads,
                          s_valid=S, exp_bf16=exp_bf16),
        out_shape=jax.ShapeDtypeStruct((B, S_pad, E), x.dtype),
        grid_spec=pltpu.PrefetchScalarGridSpec(
            num_scalar_prefetch=0,
            grid=(B, S_pad // T),
            in_specs=[
                pl.BlockSpec((1, T, E), lambda b, i: (b, i, 0)),          # Q tile
                pl.BlockSpec((1, E, S_pad), lambda b, i: (b, 0, 0),       # K^T (per-batch)
                             pipeline_mode=pl.Buffered(1)),
                pl.BlockSpec((1, S_pad, E), lambda b, i: (b, 0, 0),       # V  (per-batch)
                             pipeline_mode=pl.Buffered(1)),
                const_spec(wo_t), const_spec(bo2),
            ],
            out_specs=pl.BlockSpec((1, T, E), lambda b, i: (b, i, 0)),
            scratch_shapes=[pltpu.VMEM((T, E), jnp.bfloat16)],            # head-output slab
        ),
        compiler_params=cparams2,
    )(q, k_t, v, wo_t, bo2)

    if S_pad != S:
        out = out[:, :S, :]
    return out


# ---------------------------------------------------------------------------
# Pure-JAX reference (f32) mirroring PyTorch semantics, for the sanity check
# ---------------------------------------------------------------------------
def _reference(x, gamma, beta, in_proj_w, in_proj_b, out_proj_w, out_proj_b,
               *, num_heads, eps=1e-5):
    B, S, E = x.shape
    Dh = E // num_heads
    mean = jnp.mean(x, axis=-1, keepdims=True)
    var = jnp.mean((x - mean) ** 2, axis=-1, keepdims=True)
    xn = (x - mean) / jnp.sqrt(var + eps) * gamma + beta
    qkv = jnp.einsum('bse,fe->bsf', xn, in_proj_w) + in_proj_b
    q, k, v = jnp.split(qkv, 3, axis=-1)
    q = q.reshape(B, S, num_heads, Dh).transpose(0, 2, 1, 3)
    k = k.reshape(B, S, num_heads, Dh).transpose(0, 2, 1, 3)
    v = v.reshape(B, S, num_heads, Dh).transpose(0, 2, 1, 3)
    scores = jnp.einsum('bhqd,bhkd->bhqk', q, k) / math.sqrt(Dh)
    p = jax.nn.softmax(scores, axis=-1)
    o = jnp.einsum('bhqk,bhkd->bhqd', p, v)
    o = o.transpose(0, 2, 1, 3).reshape(B, S, E)
    return jnp.einsum('bse,fe->bsf', o, out_proj_w) + out_proj_b


if __name__ == "__main__":
    B, S, E, H = 2, 8, 32, 4

    key = jax.random.PRNGKey(0)
    kx, kw1, kb1, kw2, kb2, kg, kbn = jax.random.split(key, 7)

    x = jax.random.normal(kx, (B, S, E), dtype=jnp.float32)

    # Deterministic synthetic parameters (shapes per nn.LayerNorm / nn.MultiheadAttention).
    gamma = 1.0 + 0.05 * jax.random.normal(kg, (E,), dtype=jnp.float32)
    beta = 0.05 * jax.random.normal(kbn, (E,), dtype=jnp.float32)
    in_proj_w = jax.random.normal(kw1, (3 * E, E), dtype=jnp.float32) / math.sqrt(E)
    in_proj_b = 0.02 * jax.random.normal(kb1, (3 * E,), dtype=jnp.float32)
    out_proj_w = jax.random.normal(kw2, (E, E), dtype=jnp.float32) / math.sqrt(E)
    out_proj_b = 0.02 * jax.random.normal(kb2, (E,), dtype=jnp.float32)

    out = mhsa_block(x, gamma, beta, in_proj_w, in_proj_b, out_proj_w, out_proj_b,
                     num_heads=H)
    out = jax.block_until_ready(out)

    ref = _reference(x, gamma, beta, in_proj_w, in_proj_b, out_proj_w, out_proj_b,
                     num_heads=H)
    assert out.shape == (B, S, E)
    # bf16 MXU operands (+ bf16 EUP exp on v6e/v7x) + approx reciprocal vs f32 reference.
    assert jnp.allclose(out, ref, atol=5e-2, rtol=5e-2), \
        f"mismatch vs reference (max abs err {jnp.max(jnp.abs(out - ref))})"

    print("KERNEL_OK")
</pallas_src>

<mosaic_0001>
module attributes {stable_mosaic.version = 11 : i64} {
  func.func @_ln_qkv_kernel(%arg0: i32, %arg1: i32, %arg2: memref<1x8x32xf32, #tpu.memory_space<vmem>>, %arg3: memref<1x32xf32, #tpu.memory_space<vmem>>, %arg4: memref<1x32xf32, #tpu.memory_space<vmem>>, %arg5: memref<32x96xbf16, #tpu.memory_space<vmem>>, %arg6: memref<1x96xf32, #tpu.memory_space<vmem>>, %arg7: memref<1x8x32xbf16, #tpu.memory_space<vmem>>, %arg8: memref<1x32x8xbf16, #tpu.memory_space<vmem>>, %arg9: memref<1x8x32xbf16, #tpu.memory_space<vmem>>) attributes {dimension_semantics = [#tpu.dimension_semantics<parallel>, #tpu.dimension_semantics<parallel>], iteration_bounds = array<i64: 2, 1>, scalar_prefetch = 0 : i64, scratch_operands = 0 : i64, tpu.core_type = #tpu.core_type<tc>, window_params = [{transform_indices = @transform_0, window_bounds = array<i64: 1, 8, 32>}, {pipeline_mode = #tpu.pipeline_mode<synchronous>, transform_indices = @transform_1, window_bounds = array<i64: 1, 32>}, {pipeline_mode = #tpu.pipeline_mode<synchronous>, transform_indices = @transform_2, window_bounds = array<i64: 1, 32>}, {pipeline_mode = #tpu.pipeline_mode<synchronous>, transform_indices = @transform_3, window_bounds = array<i64: 32, 96>}, {pipeline_mode = #tpu.pipeline_mode<synchronous>, transform_indices = @transform_4, window_bounds = array<i64: 1, 96>}, {transform_indices = @transform_5, window_bounds = array<i64: 1, 8, 32>}, {transform_indices = @transform_6, window_bounds = array<i64: 1, 32, 8>}, {transform_indices = @transform_7, window_bounds = array<i64: 1, 8, 32>}]} {
    %c0 = arith.constant 0 : index
    %c0_0 = arith.constant 0 : index
    %c0_1 = arith.constant 0 : index
    %0 = vector.load %arg2[%c0, %c0_0, %c0_1] : memref<1x8x32xf32, #tpu.memory_space<vmem>>, vector<1x8x32xf32>
    %1 = vector.shape_cast %0 : vector<1x8x32xf32> to vector<8x32xf32>
    %cst = arith.constant dense<0.000000e+00> : vector<8xf32>
    %2 = vector.multi_reduction <add>, %1, %cst [1] : vector<8x32xf32> to vector<8xf32>
    %3 = vector.shape_cast %2 : vector<8xf32> to vector<8x1xf32>
    %cst_2 = arith.constant 3.200000e+01 : f32
    %4 = vector.broadcast %cst_2 : f32 to vector<8x1xf32>
    %5 = arith.divf %3, %4 : vector<8x1xf32>
    %6 = vector.broadcast %5 : vector<8x1xf32> to vector<8x32xf32>
    %7 = arith.subf %1, %6 : vector<8x32xf32>
    %8 = arith.mulf %7, %7 : vector<8x32xf32>
    %cst_3 = arith.constant dense<0.000000e+00> : vector<8xf32>
    %9 = vector.multi_reduction <add>, %8, %cst_3 [1] : vector<8x32xf32> to vector<8xf32>
    %10 = vector.shape_cast %9 : vector<8xf32> to vector<8x1xf32>
    %cst_4 = arith.constant 3.200000e+01 : f32
    %11 = vector.broadcast %cst_4 : f32 to vector<8x1xf32>
    %12 = arith.divf %10, %11 : vector<8x1xf32>
    %13 = vector.broadcast %5 : vector<8x1xf32> to vector<8x32xf32>
    %14 = arith.subf %1, %13 : vector<8x32xf32>
    %cst_5 = arith.constant 9.99999974E-6 : f32
    %15 = vector.broadcast %cst_5 : f32 to vector<8x1xf32>
    %16 = arith.addf %12, %15 : vector<8x1xf32>
    %17 = math.rsqrt %16 : vector<8x1xf32>
    %18 = vector.broadcast %17 : vector<8x1xf32> to vector<8x32xf32>
    %19 = arith.mulf %14, %18 : vector<8x32xf32>
    %c0_6 = arith.constant 0 : index
    %c0_7 = arith.constant 0 : index
    %20 = vector.load %arg3[%c0_6, %c0_7] : memref<1x32xf32, #tpu.memory_space<vmem>>, vector<1x32xf32>
    %21 = vector.shape_cast %20 : vector<1x32xf32> to vector<32xf32>
    %22 = vector.shape_cast %21 : vector<32xf32> to vector<1x32xf32>
    %23 = vector.broadcast %22 : vector<1x32xf32> to vector<8x32xf32>
    %24 = arith.mulf %19, %23 : vector<8x32xf32>
    %c0_8 = arith.constant 0 : index
    %c0_9 = arith.constant 0 : index
    %25 = vector.load %arg4[%c0_8, %c0_9] : memref<1x32xf32, #tpu.memory_space<vmem>>, vector<1x32xf32>
    %26 = vector.shape_cast %25 : vector<1x32xf32> to vector<32xf32>
    %27 = vector.shape_cast %26 : vector<32xf32> to vector<1x32xf32>
    %28 = vector.broadcast %27 : vector<1x32xf32> to vector<8x32xf32>
    %29 = arith.addf %24, %28 : vector<8x32xf32>
    %30 = arith.truncf %29 : vector<8x32xf32> to vector<8x32xbf16>
    %c0_10 = arith.constant 0 : index
    %c0_11 = arith.constant 0 : index
    %31 = vector.load %arg5[%c0_10, %c0_11] : memref<32x96xbf16, #tpu.memory_space<vmem>>, vector<32x96xbf16>
    %cst_12 = arith.constant dense<0.000000e+00> : vector<8x96xf32>
    %32 = tpu.matmul %30, %31, %cst_12 {dimension_numbers = #tpu.dot_dimension_numbers<[1], [0], [0], [1], [0, 0, 1, 1], [], []>} : vector<8x32xbf16>, vector<32x96xbf16>, vector<8x96xf32> -> vector<8x96xf32>
    %c0_13 = arith.constant 0 : index
    %c0_14 = arith.constant 0 : index
    %33 = vector.load %arg6[%c0_13, %c0_14] : memref<1x96xf32, #tpu.memory_space<vmem>>, vector<1x96xf32>
    %34 = vector.shape_cast %33 : vector<1x96xf32> to vector<96xf32>
    %35 = vector.shape_cast %34 : vector<96xf32> to vector<1x96xf32>
    %36 = vector.broadcast %35 : vector<1x96xf32> to vector<8x96xf32>
    %37 = arith.addf %32, %36 : vector<8x96xf32>
    %38 = vector.extract_strided_slice %37 {offsets = [0, 0], sizes = [8, 32], strides = [1, 1]} : vector<8x96xf32> to vector<8x32xf32>
    %39 = arith.truncf %38 : vector<8x32xf32> to vector<8x32xbf16>
    %c0_15 = arith.constant 0 : index
    %c0_16 = arith.constant 0 : index
    %c0_17 = arith.constant 0 : index
    %40 = vector.load %arg7[%c0_15, %c0_16, %c0_17] : memref<1x8x32xbf16, #tpu.memory_space<vmem>>, vector<1x8x32xbf16>
    %41 = vector.shape_cast %40 : vector<1x8x32xbf16> to vector<8x32xbf16>
    %42 = vector.shape_cast %39 : vector<8x32xbf16> to vector<1x8x32xbf16>
    tpu.vector_store %arg7[%c0_15, %c0_16, %c0_17], %42 {strides = array<i32>} : memref<1x8x32xbf16, #tpu.memory_space<vmem>>, vector<1x8x32xbf16>,
    %43 = vector.extract_strided_slice %37 {offsets = [0, 32], sizes = [8, 32], strides = [1, 1]} : vector<8x96xf32> to vector<8x32xf32>
    %44 = tpu.transpose %43, [1, 0] : vector<8x32xf32> -> vector<32x8xf32>
    %45 = arith.truncf %44 : vector<32x8xf32> to vector<32x8xbf16>
    %c0_18 = arith.constant 0 : index
    %c0_19 = arith.constant 0 : index
    %c0_20 = arith.constant 0 : index
    %46 = vector.load %arg8[%c0_18, %c0_19, %c0_20] : memref<1x32x8xbf16, #tpu.memory_space<vmem>>, vector<1x32x8xbf16>
    %47 = vector.shape_cast %46 : vector<1x32x8xbf16> to vector<32x8xbf16>
    %48 = vector.shape_cast %45 : vector<32x8xbf16> to vector<1x32x8xbf16>
    tpu.vector_store %arg8[%c0_18, %c0_19, %c0_20], %48 {strides = array<i32>} : memref<1x32x8xbf16, #tpu.memory_space<vmem>>, vector<1x32x8xbf16>,
    %49 = vector.extract_strided_slice %37 {offsets = [0, 64], sizes = [8, 32], strides = [1, 1]} : vector<8x96xf32> to vector<8x32xf32>
    %50 = arith.truncf %49 : vector<8x32xf32> to vector<8x32xbf16>
    %c0_21 = arith.constant 0 : index
    %c0_22 = arith.constant 0 : index
    %c0_23 = arith.constant 0 : index
    %51 = vector.load %arg9[%c0_21, %c0_22, %c0_23] : memref<1x8x32xbf16, #tpu.memory_space<vmem>>, vector<1x8x32xbf16>
    %52 = vector.shape_cast %51 : vector<1x8x32xbf16> to vector<8x32xbf16>
    %53 = vector.shape_cast %50 : vector<8x32xbf16> to vector<1x8x32xbf16>
    tpu.vector_store %arg9[%c0_21, %c0_22, %c0_23], %53 {strides = array<i32>} : memref<1x8x32xbf16, #tpu.memory_space<vmem>>, vector<1x8x32xbf16>,
    return
  }
  func.func @transform_0(%arg0: i32, %arg1: i32) -> (i32, i32, i32) {
    %c0_i32 = arith.constant 0 : i32
    %c0_i32_0 = arith.constant 0 : i32
    return %arg0, %arg1, %c0_i32 : i32, i32, i32
  }
  func.func @transform_1(%arg0: i32, %arg1: i32) -> (i32, i32) {
    %c0_i32 = arith.constant 0 : i32
    %c0_i32_0 = arith.constant 0 : i32
    %c0_i32_1 = arith.constant 0 : i32
    return %c0_i32, %c0_i32_0 : i32, i32
  }
  func.func @transform_2(%arg0: i32, %arg1: i32) -> (i32, i32) {
    %c0_i32 = arith.constant 0 : i32
    %c0_i32_0 = arith.constant 0 : i32
    %c0_i32_1 = arith.constant 0 : i32
    return %c0_i32, %c0_i32_0 : i32, i32
  }
  func.func @transform_3(%arg0: i32, %arg1: i32) -> (i32, i32) {
    %c0_i32 = arith.constant 0 : i32
    %c0_i32_0 = arith.constant 0 : i32
    %c0_i32_1 = arith.constant 0 : i32
    return %c0_i32, %c0_i32_0 : i32, i32
  }
  func.func @transform_4(%arg0: i32, %arg1: i32) -> (i32, i32) {
    %c0_i32 = arith.constant 0 : i32
    %c0_i32_0 = arith.constant 0 : i32
    %c0_i32_1 = arith.constant 0 : i32
    return %c0_i32, %c0_i32_0 : i32, i32
  }
  func.func @transform_5(%arg0: i32, %arg1: i32) -> (i32, i32, i32) {
    %c0_i32 = arith.constant 0 : i32
    %c0_i32_0 = arith.constant 0 : i32
    return %arg0, %arg1, %c0_i32 : i32, i32, i32
  }
  func.func @transform_6(%arg0: i32, %arg1: i32) -> (i32, i32, i32) {
    %c0_i32 = arith.constant 0 : i32
    %c0_i32_0 = arith.constant 0 : i32
    return %arg0, %c0_i32, %arg1 : i32, i32, i32
  }
  func.func @transform_7(%arg0: i32, %arg1: i32) -> (i32, i32, i32) {
    %c0_i32 = arith.constant 0 : i32
    %c0_i32_0 = arith.constant 0 : i32
    return %arg0, %arg1, %c0_i32 : i32, i32, i32
  }
}

</mosaic_0001>

<llo_original>
// kernel: tpu_custom_call.1
$region0: #{tpu_custom_call.1}
  #allocation0 [shape = 'u32[]', space=smem, size = 0x4, offset = 0x4, fixed_abs, tag = 'smem constant byte address 0x4 - core index']
  #allocation1 [shape = 'u32[144,128]{1,0:T(1,128)}', space=vmem, size = 0x12000, scoped, tag = 'internal scratch']
  %s0 = inlined_call_operand.hbm [shape: f32[2,8,32], index: 0, kind: input, shape index: {}]
  %s1 = inlined_call_operand.vmem [shape: f32[1,32], index: 1, kind: input, shape index: {}]
  %s2 = inlined_call_operand.vmem [shape: f32[1,32], index: 2, kind: input, shape index: {}]
  %s3 = inlined_call_operand.hbm [shape: bf16[32,96], index: 3, kind: input, shape index: {}]
  %s4 = inlined_call_operand.vmem [shape: f32[1,96], index: 4, kind: input, shape index: {}]
  %s5 = inlined_call_operand.hbm [shape: bf16[2,8,32], index: 5, kind: output, shape index: {0}]
  %s6 = inlined_call_operand.vmem [shape: bf16[2,32,8], index: 6, kind: output, shape index: {1}]
  %s7 = inlined_call_operand.hbm [shape: bf16[2,8,32], index: 7, kind: output, shape index: {2}]
  %8 = xla_tuple %s5, %s6, %s7
  %s9 = sld [smem:[#allocation0]]
  $region77: #{tpu_custom_call.1} parent=0
    _
  %s11 = ssub.s32 1, %s9
  %s12 = scalar_select 0, %s11, %s9
  $region1: #{tpu_custom_call.1} parent=0
    #allocation2 [shape = 'u8[8192]{0}', space=vmem, size = 0x2000, scoped, tag = 'input window, operand 0']
    #allocation3 [shape = 's32[2]{0}', space=sflag, size = 0x8, scoped, tag = 'scoped memory for tpu_custom_call.1']
    #allocation4 [shape = 's32[2]{0}', space=sflag, size = 0x8, scoped, tag = 'scoped memory for tpu_custom_call.1']
    #allocation5 [shape = 'u8[8192]{0}', space=vmem, size = 0x2000, scoped, tag = 'input window, operand 3, single buffered']
    #allocation6 [shape = 's32[1]{0}', space=sflag, size = 0x4, scoped, tag = 'scoped memory for tpu_custom_call.1']
    #allocation7 [shape = 'u8[4096]{0}', space=vmem, size = 0x1000, scoped, tag = 'output window, operand 0']
    #allocation8 [shape = 'u8[4096]{0}', space=vmem, size = 0x1000, scoped, tag = 'output window, operand 2']
    #allocation9 [shape = 's32[2]{0}', space=sflag, size = 0x8, scoped, tag = 'scoped memory for tpu_custom_call.1']
    %13 = vsyncpa [#allocation3], 0
    %s14 = scalar_lea.sflag [#allocation3], 1
    %15 = vsyncpa %s14, 0
    %16 = vsyncpa [#allocation6], 0
    %17 = vsyncpa [#allocation4], 0
    %s18 = scalar_lea.sflag [#allocation4], 1
    %19 = vsyncpa %s18, 0
    %20 = vsyncpa [#allocation9], 0
    %s21 = scalar_lea.sflag [#allocation9], 1
    %22 = vsyncpa %s21, 0
    loop: start=0, step=1, limit=4
    $region2: #{tpu_custom_call.1} parent=1 // loop_pre_header
      _
    $region3: #{tpu_custom_call.1} parent=1 // loop_header
      %s24 = sphi 0, %s28
      %p25 = scmp.ge.s32.totalorder %s24, 4
      %s31 = sphi 0, %s43
      %s32 = sphi 0, %s39
      %s33 = sphi 0, %s31
      %s34 = sphi 0, %s32
      %s35 = sphi 0, %s33
      %s36 = sphi 0, %s34
      %s48 = sphi 0, %s50
      %s51 = sphi 0, %s48
      %s52 = sphi 0, %s51
      %s68 = sphi 0, %s52
      %s72 = sphi 0, %s72
      %s74 = sphi 0, %s72
      %s75 = sphi 0, %s74
      %s89 = sphi 0, %s75
      %s93 = sphi 0, %s93
      %s95 = sphi 0, %s93
      %s96 = sphi 0, %s95
      %s110 = sphi 0, %s96
      %s114 = sphi 0, %s114
      %s116 = sphi 0, %s114
      %s117 = sphi 0, %s116
      %s131 = sphi 0, %s117
      %s135 = sphi 0, %s135
      %s137 = sphi 0, %s135
      %s138 = sphi 0, %s137
      %s152 = sphi 0, %s138
      %s160 = sphi 0, %s162
      %s163 = sphi 0, %s160
      %s164 = sphi 0, %s163
      %s180 = sphi 0, %s164
      %s188 = sphi 0, %s190
      %s191 = sphi 0, %s188
      %s192 = sphi 0, %s191
      %s208 = sphi 0, %s192
      %s216 = sphi 0, %s218
      %s219 = sphi 0, %s216
      %s220 = sphi 0, %s219
      %s236 = sphi 0, %s220
    $region4: #{tpu_custom_call.1} parent=1 // loop_header_branch
      %27 = sbr.rel (%p25) target = $region8
    $region5: #{tpu_custom_call.1} parent=1 // loop_body
      %s29 = ssub.s32 %s24, 1
      %s30 = ssub.s32 %s24, 2
      %s37 = sadd.s32 1, %s32
      %p38 = scmp.ge.s32.totalorder %s37, 1
      %s39 = scalar_select %p38, 0, %s37
      %s40 = sadd.s32 1, %s31
      %s41 = scalar_select %p38, %s40, %s31
      %p42 = scmp.ge.s32.totalorder %s41, 2
      %s43 = scalar_select %p42, 0, %s41
      %s44 = ssub.s32 %s31, %s43
      %s45 = ssub.s32 %s32, %s39
      %s46 = sor.u32 %s44, %s45
      %p47 = scmp.eq.s32.totalorder %s46, 0
      %s49 = sadd.s32 %s48, 1
      %s50 = scalar_select %p47, %s48, %s49
      %p53 = pneg %p47
      %p54 = scmp.eq.s32.totalorder %s24, 1
      %p55 = por %p53, %p54
      %p56 = scmp.ne.s32.totalorder %s48, %s51
      %p57 = scmp.eq.s32.totalorder %s24, 0
      %p58 = por %p56, %p57
      %p59 = scmp.ne.s32.totalorder %s48, %s51
      %p60 = scmp.eq.s32.totalorder %s29, 1
      %p61 = por %p59, %p60
      %p62 = scmp.ne.s32.totalorder %s51, %s52
      %p63 = scmp.eq.s32.totalorder %s29, 0
      %p64 = por %p62, %p63
      %p65 = scmp.ne.s32.totalorder %s51, %s52
      %p66 = scmp.eq.s32.totalorder %s30, 1
      %p67 = por %p65, %p66
      %p69 = scmp.ne.s32.totalorder %s52, %s68
      %p70 = scmp.eq.s32.totalorder %s30, 0
      %p71 = por %p69, %p70
      %s73 = sadd.s32 %s72, 1
      %p76 = scmp.eq.s32.totalorder %s24, 1
      %p77 = scmp.ne.s32.totalorder %s72, %s74
      %p78 = scmp.eq.s32.totalorder %s24, 0
      %p79 = por %p77, %p78
      %p80 = scmp.ne.s32.totalorder %s72, %s74
      %p81 = scmp.eq.s32.totalorder %s29, 1
      %p82 = por %p80, %p81
      %p83 = scmp.ne.s32.totalorder %s74, %s75
      %p84 = scmp.eq.s32.totalorder %s29, 0
      %p85 = por %p83, %p84
      %p86 = scmp.ne.s32.totalorder %s74, %s75
      %p87 = scmp.eq.s32.totalorder %s30, 1
      %p88 = por %p86, %p87
      %p90 = scmp.ne.s32.totalorder %s75, %s89
      %p91 = scmp.eq.s32.totalorder %s30, 0
      %p92 = por %p90, %p91
      %s94 = sadd.s32 %s93, 1
      %p97 = scmp.eq.s32.totalorder %s24, 1
      %p98 = scmp.ne.s32.totalorder %s93, %s95
      %p99 = scmp.eq.s32.totalorder %s24, 0
      %p100 = por %p98, %p99
      %p101 = scmp.ne.s32.totalorder %s93, %s95
      %p102 = scmp.eq.s32.totalorder %s29, 1
      %p103 = por %p101, %p102
      %p104 = scmp.ne.s32.totalorder %s95, %s96
      %p105 = scmp.eq.s32.totalorder %s29, 0
      %p106 = por %p104, %p105
      %p107 = scmp.ne.s32.totalorder %s95, %s96
      %p108 = scmp.eq.s32.totalorder %s30, 1
      %p109 = por %p107, %p108
      %p111 = scmp.ne.s32.totalorder %s96, %s110
      %p112 = scmp.eq.s32.totalorder %s30, 0
      %p113 = por %p111, %p112
      %s115 = sadd.s32 %s114, 1
      %p118 = scmp.eq.s32.totalorder %s24, 1
      %p119 = scmp.ne.s32.totalorder %s114, %s116
      %p120 = scmp.eq.s32.totalorder %s24, 0
      %p121 = por %p119, %p120
      %p122 = scmp.ne.s32.totalorder %s114, %s116
      %p123 = scmp.eq.s32.totalorder %s29, 1
      %p124 = por %p122, %p123
      %p125 = scmp.ne.s32.totalorder %s116, %s117
      %p126 = scmp.eq.s32.totalorder %s29, 0
      %p127 = por %p125, %p126
      %p128 = scmp.ne.s32.totalorder %s116, %s117
      %p129 = scmp.eq.s32.totalorder %s30, 1
      %p130 = por %p128, %p129
      %p132 = scmp.ne.s32.totalorder %s117, %s131
      %p133 = scmp.eq.s32.totalorder %s30, 0
      %p134 = por %p132, %p133
      %s136 = sadd.s32 %s135, 1
      %p139 = scmp.eq.s32.totalorder %s24, 1
      %p140 = scmp.ne.s32.totalorder %s135, %s137
      %p141 = scmp.eq.s32.totalorder %s24, 0
      %p142 = por %p140, %p141
      %p143 = scmp.ne.s32.totalorder %s135, %s137
      %p144 = scmp.eq.s32.totalorder %s29, 1
      %p145 = por %p143, %p144
      %p146 = scmp.ne.s32.totalorder %s137, %s138
      %p147 = scmp.eq.s32.totalorder %s29, 0
      %p148 = por %p146, %p147
      %p149 = scmp.ne.s32.totalorder %s137, %s138
      %p150 = scmp.eq.s32.totalorder %s30, 1
      %p151 = por %p149, %p150
      %p153 = scmp.ne.s32.totalorder %s138, %s152
      %p154 = scmp.eq.s32.totalorder %s30, 0
      %p155 = por %p153, %p154
      %s156 = ssub.s32 %s31, %s43
      %s157 = ssub.s32 %s32, %s39
      %s158 = sor.u32 %s156, %s157
      %p159 = scmp.eq.s32.totalorder %s158, 0
      %s161 = sadd.s32 %s160, 1
      %s162 = scalar_select %p159, %s160, %s161
      %p165 = pneg %p159
      %p166 = scmp.eq.s32.totalorder %s24, 1
      %p167 = por %p165, %p166
      %p168 = scmp.ne.s32.totalorder %s160, %s163
      %p169 = scmp.eq.s32.totalorder %s24, 0
      %p170 = por %p168, %p169
      %p171 = scmp.ne.s32.totalorder %s160, %s163
      %p172 = scmp.eq.s32.totalorder %s29, 1
      %p173 = por %p171, %p172
      %p174 = scmp.ne.s32.totalorder %s163, %s164
      %p175 = scmp.eq.s32.totalorder %s29, 0
      %p176 = por %p174, %p175
      %p177 = scmp.ne.s32.totalorder %s163, %s164
      %p178 = scmp.eq.s32.totalorder %s30, 1
      %p179 = por %p177, %p178
      %p181 = scmp.ne.s32.totalorder %s164, %s180
      %p182 = scmp.eq.s32.totalorder %s30, 0
      %p183 = por %p181, %p182
      %s184 = ssub.s32 %s31, %s43
      %s185 = ssub.s32 %s32, %s39
      %s186 = sor.u32 %s184, %s185
      %p187 = scmp.eq.s32.totalorder %s186, 0
      %s189 = sadd.s32 %s188, 1
      %s190 = scalar_select %p187, %s188, %s189
      %p193 = pneg %p187
      %p194 = scmp.eq.s32.totalorder %s24, 1
      %p195 = por %p193, %p194
      %p196 = scmp.ne.s32.totalorder %s188, %s191
      %p197 = scmp.eq.s32.totalorder %s24, 0
      %p198 = por %p196, %p197
      %p199 = scmp.ne.s32.totalorder %s188, %s191
      %p200 = scmp.eq.s32.totalorder %s29, 1
      %p201 = por %p199, %p200
      %p202 = scmp.ne.s32.totalorder %s191, %s192
      %p203 = scmp.eq.s32.totalorder %s29, 0
      %p204 = por %p202, %p203
      %p205 = scmp.ne.s32.totalorder %s191, %s192
      %p206 = scmp.eq.s32.totalorder %s30, 1
      %p207 = por %p205, %p206
      %p209 = scmp.ne.s32.totalorder %s192, %s208
      %p210 = scmp.eq.s32.totalorder %s30, 0
      %p211 = por %p209, %p210
      %s212 = ssub.s32 %s31, %s43
      %s213 = ssub.s32 %s32, %s39
      %s214 = sor.u32 %s212, %s213
      %p215 = scmp.eq.s32.totalorder %s214, 0
      %s217 = sadd.s32 %s216, 1
      %s218 = scalar_select %p215, %s216, %s217
      %p221 = pneg %p215
      %p222 = scmp.eq.s32.totalorder %s24, 1
      %p223 = por %p221, %p222
      %p224 = scmp.ne.s32.totalorder %s216, %s219
      %p225 = scmp.eq.s32.totalorder %s24, 0
      %p226 = por %p224, %p225
      %p227 = scmp.ne.s32.totalorder %s216, %s219
      %p228 = scmp.eq.s32.totalorder %s29, 1
      %p229 = por %p227, %p228
      %p230 = scmp.ne.s32.totalorder %s219, %s220
      %p231 = scmp.eq.s32.totalorder %s29, 0
      %p232 = por %p230, %p231
      %p233 = scmp.ne.s32.totalorder %s219, %s220
      %p234 = scmp.eq.s32.totalorder %s30, 1
      %p235 = por %p233, %p234
      %p237 = scmp.ne.s32.totalorder %s220, %s236
      %p238 = scmp.eq.s32.totalorder %s30, 0
      %p239 = por %p237, %p238
      %p240 = scmp.le.s32.totalorder 1, %s24
      %p241 = scmp.lt.s32.totalorder %s24, 3
      %p242 = pnand %p240, %p241
      %p243 = pneg %p242
      // Predicated region
      $region9: #{tpu_custom_call.1} parent=5 // pred_check
        _
      $region10: #{tpu_custom_call.1} parent=5 // pred_check_branch
        %245 = sbr.rel (%p242) target = $region12
      $region11: #{tpu_custom_call.1} parent=5 // pred_region
        %s246 = ssub.s32 %s24, 1
        // Predicated region
        $region13: #{tpu_custom_call.1} parent=11 // pred_check
          %p247 = pneg %p85
        $region14: #{tpu_custom_call.1} parent=11 // pred_check_branch
          %249 = sbr.rel (%p247) target = $region16
        $region15: #{tpu_custom_call.1} parent=11 // pred_region
          _
        $region16: #{tpu_custom_call.1} parent=11 // pred_fallthru
          _
        // Predicated region
        $region17: #{tpu_custom_call.1} parent=11 // pred_check
          %p250 = pneg %p106
        $region18: #{tpu_custom_call.1} parent=11 // pred_check_branch
          %252 = sbr.rel (%p250) target = $region20
        $region19: #{tpu_custom_call.1} parent=11 // pred_region
          _
        $region20: #{tpu_custom_call.1} parent=11 // pred_fallthru
          _
        // Predicated region
        $region21: #{tpu_custom_call.1} parent=11 // pred_check
          %p253 = pneg %p127
        $region22: #{tpu_custom_call.1} parent=11 // pred_check_branch
          %255 = sbr.rel (%p253) target = $region24
        $region23: #{tpu_custom_call.1} parent=11 // pred_region
          %s257 = ssub.s32 256, 256
          %258 = vsyncadd [#allocation6], %s257
          %s259 = sshll.u32 [#allocation5], 4
          %s260 = int_to_ptr.vmem [resolvable:$true] %s259
          %265 = dma.hbm_to_vmem [thread:$0]  %s3, 256, %s260, [#allocation6], 64, 64, 4
        $region24: #{tpu_custom_call.1} parent=11 // pred_fallthru
          _
        // Predicated region
        $region25: #{tpu_custom_call.1} parent=11 // pred_check
          %p266 = pneg %p148
        $region26: #{tpu_custom_call.1} parent=11 // pred_check_branch
          %268 = sbr.rel (%p266) target = $region28
        $region27: #{tpu_custom_call.1} parent=11 // pred_region
          _
        $region28: #{tpu_custom_call.1} parent=11 // pred_fallthru
          _
      $region12: #{tpu_custom_call.1} parent=5 // pred_fallthru
        _
      %p269 = scmp.lt.s32.totalorder %s24, 2
      // Predicated region
      $region29: #{tpu_custom_call.1} parent=5 // pred_check
        %p270 = pneg %p269
      $region30: #{tpu_custom_call.1} parent=5 // pred_check_branch
        %272 = sbr.rel (%p270) target = $region32
      $region31: #{tpu_custom_call.1} parent=5 // pred_region
        // Predicated region
        $region33: #{tpu_custom_call.1} parent=31 // pred_check
          %p273 = pneg %p58
        $region34: #{tpu_custom_call.1} parent=31 // pred_check_branch
          %275 = sbr.rel (%p273) target = $region36
        $region35: #{tpu_custom_call.1} parent=31 // pred_region
          %s276 = sand.u32 %s48, 1
          %s277 = scalar_lea.sflag [#allocation3], %s276
          %s278 = sand.u32 %s48, 1
          %s279 = smul.addr %s278, 8
          %s280 = scalar_lea.vmem [#allocation2], %s279
          %s282 = ssub.s32 128, 128
          %283 = vsyncadd %s277, %s282
          %s284 = sadd.s32 %s32, %s31
          %s285 = smul.addr %s284, 128
          %s286 = scalar_lea.hbm %s0, %s285
          %s288 = sshll.u32 %s280, 4
          %s289 = int_to_ptr.vmem [resolvable:$true] %s288
          %291 = dma.hbm_to_vmem [thread:$0]  %s286, 128, %s289, %s277
        $region36: #{tpu_custom_call.1} parent=31 // pred_fallthru
          _
      $region32: #{tpu_custom_call.1} parent=5 // pred_fallthru
        _
      %p292 = scmp.le.s32.totalorder 1, %s24
      %p293 = scmp.lt.s32.totalorder %s24, 3
      %p294 = pnand %p292, %p293
      %p295 = pneg %p294
      // Predicated region
      $region37: #{tpu_custom_call.1} parent=5 // pred_check
        _
      $region38: #{tpu_custom_call.1} parent=5 // pred_check_branch
        %297 = sbr.rel (%p294) target = $region40
      $region39: #{tpu_custom_call.1} parent=5 // pred_region
        %s298 = ssub.s32 %s24, 1
        %s299 = sand.u32 %s51, 1
        %s300 = scalar_lea.sflag [#allocation3], %s299
        %s301 = sand.u32 %s51, 1
        %s302 = smul.addr %s301, 8
        %s303 = scalar_lea.vmem [#allocation2], %s302
        // Predicated region
        $region41: #{tpu_custom_call.1} parent=39 // pred_check
          %p304 = pneg %p64
        $region42: #{tpu_custom_call.1} parent=39 // pred_check_branch
          %306 = sbr.rel (%p304) target = $region44
        $region43: #{tpu_custom_call.1} parent=39 // pred_region
          %307 = dma.done %s300, 128
        $region44: #{tpu_custom_call.1} parent=39 // pred_fallthru
          _
        // Predicated region
        $region45: #{tpu_custom_call.1} parent=39 // pred_check
          %p308 = pneg %p127
        $region46: #{tpu_custom_call.1} parent=39 // pred_check_branch
          %310 = sbr.rel (%p308) target = $region48
        $region47: #{tpu_custom_call.1} parent=39 // pred_region
          %311 = dma.done [#allocation6], 256
        $region48: #{tpu_custom_call.1} parent=39 // pred_fallthru
          _
        %s312 = sand.u32 %s51, 1
        %s313 = scalar_lea.sflag [#allocation3], %s312
        %s314 = sand.u32 %s51, 1
        %s315 = smul.addr %s314, 8
        %s316 = scalar_lea.vmem [#allocation2], %s315
        %p317 = pneg %p64
        %p318 = pneg %p61
        %p319 = pneg %p85
        %p320 = pneg %p82
        %p321 = pneg %p106
        %p322 = pneg %p103
        %p323 = pneg %p127
        %p324 = pneg %p124
        %p325 = pneg %p148
        %p326 = pneg %p145
        %p327 = pneg %p176
        %p328 = pneg %p173
        %s329 = sand.u32 %s163, 1
        %s330 = scalar_lea.sflag [#allocation4], %s329
        %s331 = sand.u32 %s163, 1
        %s332 = smul.addr %s331, 4
        %s333 = scalar_lea.vmem [#allocation7], %s332
        %p334 = pneg %p204
        %p335 = pneg %p201
        %p336 = scmp.lt.s32.totalorder %s33, 1
        %s337 = scalar_select %p336, %s33, 1
        %p338 = scmp.lt.s32.totalorder %s34, 0
        %s339 = scalar_select %p338, %s34, 0
        %s340 = smul.addr %s337, 4
        %s341 = sadd.s32 %s339, %s340
        %s342 = smul.addr %s341, 4
        %s343 = scalar_lea.vmem %s6, %s342
        %p344 = pneg %p232
        %p345 = pneg %p229
        %s346 = sand.u32 %s219, 1
        %s347 = scalar_lea.sflag [#allocation9], %s346
        %s348 = sand.u32 %s219, 1
        %s349 = smul.addr %s348, 4
        %s350 = scalar_lea.vmem [#allocation8], %s349
        %p351 = scmp.lt.s32.totalorder %s33, 1
        %s352 = scalar_select %p351, %s33, 1
        %p353 = scmp.lt.s32.totalorder %s34, 0
        %s354 = scalar_select %p353, %s34, 0
        %s355 = smul.addr %s352, 4
        %s356 = sadd.s32 %s354, %s355
        %s357 = smul.addr %s356, 4
        %s358 = scalar_lea.vmem %s6, %s357
        %v360 = vld [vmem:[%s303] sm:$0xff]
        %vm361 = vcmask 261120
        %v362 = vsel %vm361, %v360, 0.0
        %363 = vadd.xlane.f32.xlu0 %v362
        %v364 = vpop.xlane.xlu0 %363
        %v365 = vrcp.pop 32.0
        %v366 = vmul.f32 %v364, %v365
        %v367 = vsub.f32 %v360, %v366
        %v368 = vmul.f32 %v367, %v367
        %v369 = vsel %vm361, %v368, 0.0
        %370 = vadd.xlane.f32.xlu0 %v369
        %v371 = vpop.xlane.xlu0 %370
        %v372 = vmul.f32 %v371, %v365
        %v373 = vadd.f32 %v372, 1e-05
        %v374 = vrsqrt.pop %v373
        %v375 = vmul.f32 %v367, %v374
        %v376 = vld [vmem:[%s1] sm:$0x1]
        %v378 = vlaneseq
        %v379 = vshrl.u32 %v378, 7
        %v380 = vsub.s32 0, %v379
        %v381 = vrot.slane %v376, %v380
        %v383 = vmul.f32 %v375, %v381
        %v384 = vld [vmem:[%s2] sm:$0x1]
        %v386 = vlaneseq
        %v387 = vshrl.u32 %v386, 7
        %v388 = vsub.s32 0, %v387
        %v389 = vrot.slane %v384, %v388
        %v391 = vadd.f32 %v383, %v389
        %v392 = vpack.c.bf16 %v391, %v391
        %v393 = vld [vmem:[#allocation5] sm:$0xf]
        %v394 = vld [vmem:[#allocation5 + $0x4] sm:$0xf]
        %v395 = vld [vmem:[#allocation5 + $0x8] sm:$0xf]
        %v396 = vld [vmem:[#allocation5 + $0xc] sm:$0xf]
        %v397 = vld [vmem:[%s4] sm:$0x1]
        %v399 = vlaneseq
        %v400 = vshrl.u32 %v399, 7
        %v401 = vsub.s32 0, %v400
        %v402 = vrot.slane %v397, %v401
        %v408 = vunpack.c.l.b16 %v393
        %v409 = vunpack.c.l.b16 %v394
        %v410 = vunpack.c.l.b16 %v395
        %v411 = vunpack.c.l.b16 %v396
        %v412 = vpack.c.b16 %v409, %v408
        %v413 = vpack.c.b16 %v411, %v410
        %v417 = vsel %vm361, %v392, 0
        %419 = vmatprep.subr.bf16.mxu0 0
        %420 = vmatpush1.bf16.msra.mxu0 %v412
        %421 = vmatprep.subr.bf16.mxu0 0
        %422 = vmatpush1.bf16.msra.mxu0 %v413
        %423 = vmatprep.subr.bf16.mxu0 0
        %424 = vmatpush1.bf16.msra.mxu0 0
        %425 = vmatprep.subr.bf16.mxu0 0
        %426 = vmatpush1.bf16.msra.mxu0 0
        %427 = vmatprep.subr.bf16.mxu0 0
        %428 = vmatpush1.bf16.msra.mxu0 0
        %429 = vmatprep.subr.bf16.mxu0 0
        %430 = vmatpush1.bf16.msra.mxu0 0
        %431 = vmatprep.subr.bf16.mxu0 0
        %432 = vmatpush1.bf16.msra.mxu0 0
        %433 = vmatprep.subr.bf16.mxu0 0
        %434 = vmatpush1.bf16.msra.mxu0 0
        %435 = vmatprep.subr.bf16.mxu0 0
        %436 = vmatpush1.bf16.msra.mxu0 0
        %437 = vmatprep.subr.bf16.mxu0 0
        %438 = vmatpush1.bf16.msra.mxu0 0
        %439 = vmatprep.subr.bf16.mxu0 0
        %440 = vmatpush1.bf16.msra.mxu0 0
        %441 = vmatprep.subr.bf16.mxu0 0
        %442 = vmatpush1.bf16.msra.mxu0 0
        %443 = vmatprep.subr.bf16.mxu0 0
        %444 = vmatpush1.bf16.msra.mxu0 0
        %445 = vmatprep.subr.bf16.mxu0 0
        %446 = vmatpush1.bf16.msra.mxu0 0
        %447 = vmatprep.subr.bf16.mxu0 0
        %448 = vmatpush1.bf16.msra.mxu0 0
        %449 = vmatprep.subr.bf16.mxu0 0
        %450 = vmatpush1.bf16.msra.mxu0 0
        %451 = vmatprep.mubr.bf16.mxu0 0
        %452 = vmatmul.mubr.bf16.gmra.mrb[0].mxu0 %v417
        %v453 = vpop.f32.mrb[0].mxu0
        %v454 = vadd.f32 %v402, %v453
        %v455 = vpop.f32.mrb[0].mxu0
        %v456 = vpop.f32.mrb[0].mxu0
        %v457 = vpop.f32.mrb[0].mxu0
        %458 = vdwg.mxu0
        %v459 = vpack.c.bf16 %v454, %v454
        %vm460 = vcmask 257024
        %461 = vst.msk [vmem:[%s333] sm:$0xf] %vm460, %v459
        %463 = vrot.lane.b32.xlu0 %v454, 96
        %v464 = vpop.permute.xlu0 %463
        %466 = vxpose.xlu0.b32.start [1/16] %v464, 128
        %467 = vxpose.xlu0.b32.cont [2/16] 0.0, 128
        %468 = vxpose.xlu0.b32.cont [3/16] 0.0, 128
        %469 = vxpose.xlu0.b32.cont [4/16] 0.0, 128
        %470 = vxpose.xlu0.b32.cont [5/16] 0.0, 128
        %471 = vxpose.xlu0.b32.cont [6/16] 0.0, 128
        %472 = vxpose.xlu0.b32.cont [7/16] 0.0, 128
        %473 = vxpose.xlu0.b32.cont [8/16] 0.0, 128
        %474 = vxpose.xlu0.b32.cont [9/16] 0.0, 128
        %475 = vxpose.xlu0.b32.cont [10/16] 0.0, 128
        %476 = vxpose.xlu0.b32.cont [11/16] 0.0, 128
        %477 = vxpose.xlu0.b32.cont [12/16] 0.0, 128
        %478 = vxpose.xlu0.b32.cont [13/16] 0.0, 128
        %479 = vxpose.xlu0.b32.cont [14/16] 0.0, 128
        %480 = vxpose.xlu0.b32.cont [15/16] 0.0, 128
        %481 = vxpose.xlu0.b32.end [16/16] 0.0, 128
        %v482 = vpop.trf.xlu0
        %v483 = vpop.trf.xlu0
        %v484 = vpop.trf.xlu0
        %v485 = vpop.trf.xlu0
        %v486 = vpop.trf.xlu0
        %v487 = vpop.trf.xlu0
        %v488 = vpop.trf.xlu0
        %v489 = vpop.trf.xlu0
        %v490 = vpop.trf.xlu0
        %v491 = vpop.trf.xlu0
        %v492 = vpop.trf.xlu0
        %v493 = vpop.trf.xlu0
        %v494 = vpop.trf.xlu0
        %v495 = vpop.trf.xlu0
        %v496 = vpop.trf.xlu0
        %v497 = vpop.trf.xlu0
        %v498 = vpack.c.bf16 %v483, %v482
        %v499 = vpack.c.bf16 %v485, %v484
        %v502 = vunpack.c.l.b16 %v498
        %v503 = vunpack.c.h.b16 %v498
        %v504 = vunpack.c.l.b16 %v499
        %v505 = vunpack.c.h.b16 %v499
        %v506 = vpack.c.b16 %v502, %v502
        %v507 = vpack.c.b16 %v503, %v503
        %v508 = vpack.c.b16 %v504, %v504
        %v509 = vpack.c.b16 %v505, %v505
        %vm514 = vcmask 60416
        %515 = vst.msk [vmem:[%s358] sm:$0xf] %vm514, %v506
        %516 = vst.msk [vmem:[%s358 + $0x4] sm:$0xf] %vm514, %v507
        %517 = vst.msk [vmem:[%s358 + $0x8] sm:$0xf] %vm514, %v508
        %518 = vst.msk [vmem:[%s358 + $0xc] sm:$0xf] %vm514, %v509
        %v520 = vunpack.c.l.b16 %v459
        %v521 = vpack.c.b16 %v520, %v520
        %522 = vrot.lane.b32.xlu0 %v521, 64
        %v523 = vpop.permute.xlu0 %522
        %525 = vst.msk [vmem:[%s350] sm:$0xf] %vm460, %v523
        %s526 = sand.u32 %s163, 1
        %s527 = scalar_lea.sflag [#allocation4], %s526
        %s528 = sand.u32 %s163, 1
        %s529 = smul.addr %s528, 4
        %s530 = scalar_lea.vmem [#allocation7], %s529
        %p531 = scmp.lt.s32.totalorder %s33, 1
        %s532 = scalar_select %p531, %s33, 1
        %p533 = scmp.lt.s32.totalorder %s34, 0
        %s534 = scalar_select %p533, %s34, 0
        %s535 = smul.addr %s532, 4
        %s536 = sadd.s32 %s534, %s535
        %s537 = smul.addr %s536, 4
        %s538 = scalar_lea.vmem %s6, %s537
        %s539 = sand.u32 %s219, 1
        %s540 = scalar_lea.sflag [#allocation9], %s539
        %s541 = sand.u32 %s219, 1
        %s542 = smul.addr %s541, 4
        %s543 = scalar_lea.vmem [#allocation8], %s542
        // Predicated region
        $region49: #{tpu_custom_call.1} parent=39 // pred_check
          %p544 = pneg %p173
        $region50: #{tpu_custom_call.1} parent=39 // pred_check_branch
          %546 = sbr.rel (%p544) target = $region52
        $region51: #{tpu_custom_call.1} parent=39 // pred_region
          %s548 = ssub.s32 64, 64
          %549 = vsyncadd %s527, %s548
          %s550 = sadd.s32 %s34, %s33
          %s551 = smul.addr %s550, 64
          %s552 = scalar_lea.hbm %s5, %s551
          %s554 = sshll.u32 %s530, 4
          %s555 = int_to_ptr.vmem [resolvable:$true] %s554
          %557 = dma.vmem_to_hbm [thread:$0]  %s555, 64, %s552, %s527
        $region52: #{tpu_custom_call.1} parent=39 // pred_fallthru
          _
        // Predicated region
        $region53: #{tpu_custom_call.1} parent=39 // pred_check
          %p558 = pneg %p201
        $region54: #{tpu_custom_call.1} parent=39 // pred_check_branch
          %560 = sbr.rel (%p558) target = $region56
        $region55: #{tpu_custom_call.1} parent=39 // pred_region
          _
        $region56: #{tpu_custom_call.1} parent=39 // pred_fallthru
          _
        // Predicated region
        $region57: #{tpu_custom_call.1} parent=39 // pred_check
          %p561 = pneg %p229
        $region58: #{tpu_custom_call.1} parent=39 // pred_check_branch
          %563 = sbr.rel (%p561) target = $region60
        $region59: #{tpu_custom_call.1} parent=39 // pred_region
          %s565 = ssub.s32 64, 64
          %566 = vsyncadd %s540, %s565
          %s567 = sadd.s32 %s34, %s33
          %s568 = smul.addr %s567, 64
          %s569 = scalar_lea.hbm %s7, %s568
          %s571 = sshll.u32 %s543, 4
          %s572 = int_to_ptr.vmem [resolvable:$true] %s571
          %574 = dma.vmem_to_hbm [thread:$0]  %s572, 64, %s569, %s540
        $region60: #{tpu_custom_call.1} parent=39 // pred_fallthru
          _
      $region40: #{tpu_custom_call.1} parent=5 // pred_fallthru
        _
      %p575 = scmp.le.s32.totalorder 2, %s24
      // Predicated region
      $region61: #{tpu_custom_call.1} parent=5 // pred_check
        %p576 = pneg %p575
      $region62: #{tpu_custom_call.1} parent=5 // pred_check_branch
        %578 = sbr.rel (%p576) target = $region64
      $region63: #{tpu_custom_call.1} parent=5 // pred_region
        %s579 = ssub.s32 %s24, 2
        // Predicated region
        $region65: #{tpu_custom_call.1} parent=63 // pred_check
          %p580 = pneg %p179
        $region66: #{tpu_custom_call.1} parent=63 // pred_check_branch
          %582 = sbr.rel (%p580) target = $region68
        $region67: #{tpu_custom_call.1} parent=63 // pred_region
          %s583 = sand.u32 %s164, 1
          %s584 = scalar_lea.sflag [#allocation4], %s583
          %s585 = sand.u32 %s164, 1
          %s586 = smul.addr %s585, 4
          %s587 = scalar_lea.vmem [#allocation7], %s586
          %588 = dma.done %s584, 64
        $region68: #{tpu_custom_call.1} parent=63 // pred_fallthru
          _
        // Predicated region
        $region69: #{tpu_custom_call.1} parent=63 // pred_check
          %p589 = pneg %p207
        $region70: #{tpu_custom_call.1} parent=63 // pred_check_branch
          %591 = sbr.rel (%p589) target = $region72
        $region71: #{tpu_custom_call.1} parent=63 // pred_region
          %p592 = scmp.lt.s32.totalorder %s35, 1
          %s593 = scalar_select %p592, %s35, 1
          %p594 = scmp.lt.s32.totalorder %s36, 0
          %s595 = scalar_select %p594, %s36, 0
          %s596 = smul.addr %s593, 4
          %s597 = sadd.s32 %s595, %s596
          %s598 = smul.addr %s597, 4
          %s599 = scalar_lea.vmem %s6, %s598
        $region72: #{tpu_custom_call.1} parent=63 // pred_fallthru
          _
        // Predicated region
        $region73: #{tpu_custom_call.1} parent=63 // pred_check
          %p600 = pneg %p235
        $region74: #{tpu_custom_call.1} parent=63 // pred_check_branch
          %602 = sbr.rel (%p600) target = $region76
        $region75: #{tpu_custom_call.1} parent=63 // pred_region
          %s603 = sand.u32 %s220, 1
          %s604 = scalar_lea.sflag [#allocation9], %s603
          %s605 = sand.u32 %s220, 1
          %s606 = smul.addr %s605, 4
          %s607 = scalar_lea.vmem [#allocation8], %s606
          %608 = dma.done %s604, 64
        $region76: #{tpu_custom_call.1} parent=63 // pred_fallthru
          _
      $region64: #{tpu_custom_call.1} parent=5 // pred_fallthru
        _
    $region6: #{tpu_custom_call.1} parent=1 // loop_footer
      %s28 = sadd.s32 1, %s24
    $region7: #{tpu_custom_call.1} parent=1 // loop_footer_branch
      %23 = sbr.rel target = $region3
    $region8: #{tpu_custom_call.1} parent=1 // loop_exit
      _
    %609 = vsyncpa [#allocation3], 1
    %s610 = scalar_lea.sflag [#allocation3], 1
    %611 = vsyncpa %s610, 1
    %612 = vsyncpa [#allocation6], 1
    %613 = vsyncpa [#allocation4], 1
    %s614 = scalar_lea.sflag [#allocation4], 1
    %615 = vsyncpa %s614, 1
    %616 = vsyncpa [#allocation9], 1
    %s617 = scalar_lea.sflag [#allocation9], 1
    %618 = vsyncpa %s617, 1

</llo_original>
